<compile_context>
chip_gen: v7x
topology: tpu7x:2x2x1
jax: 0.10.0
libtpu: 0.0.40
codegen_flags: <defaults>
</compile_context>

<pallas_src>
import jax
import jax.numpy as jnp
from jax.experimental import pallas as pl
from jax.experimental.pallas import tpu as pltpu

TOKENSIZE = 10
_LANE = 128


def _round_up(x, m):
    return (x + m - 1) // m * m


def _mlp_kernel(x_ref,
                w1_ref, b1_ref,
                w2_ref, b2_ref,
                w3_ref, b3_ref,
                w4_ref, b4_ref,
                o_ref):
    """One batch tile: (TB,4)->(TB,64)->(TB,256)->(TB,64)->(TB,tokensize)."""
    x = x_ref[...]                                # (TB, 4)  f32
    w1 = w1_ref[...]                              # (4, 64)  f32

    # ---- Layer 1 on the VPU in f32 (K=4 would waste the MXU).
    #      Two independent partial sums shorten the VALU dependency chain.
    p0 = x[:, 0:1] * w1[0:1, :] + x[:, 1:2] * w1[1:2, :]
    p1 = x[:, 2:3] * w1[2:3, :] + x[:, 3:4] * w1[3:4, :]
    h = jnp.maximum(p0 + p1 + b1_ref[...], 0.0)   # (TB, 64) f32

    # ---- Layers 2-4 on the MXU: bf16 operands, f32 accumulation,
    #      f32 bias/ReLU epilogues (VPU path stays f32 for v5e).
    h = jnp.dot(h.astype(jnp.bfloat16), w2_ref[...],
                preferred_element_type=jnp.float32) + b2_ref[...]
    h = jnp.maximum(h, 0.0)
    h = jnp.dot(h.astype(jnp.bfloat16), w3_ref[...],
                preferred_element_type=jnp.float32) + b3_ref[...]
    h = jnp.maximum(h, 0.0)
    h = jnp.dot(h.astype(jnp.bfloat16), w4_ref[...],
                preferred_element_type=jnp.float32) + b4_ref[...]
    h = jnp.maximum(h, 0.0)                       # (TB, OUT_PAD) f32; pad cols exactly 0

    # Store only the real tokensize columns: no padded HBM writeback and no
    # second XLA pass to slice a 128-wide buffer afterwards.
    o_ref[...] = h[:, :o_ref.shape[1]].astype(o_ref.dtype)


def _tpu_vmem_capacity_bytes():
    try:
        return int(pltpu.get_tpu_info().vmem_capacity_bytes)
    except Exception:
        return 64 * 1024 * 1024   # conservative fallback (v7x per-TensorCore)


def mlp_forward(x, params, *, tile_b=None):
    """x: (B, 4) float32.  params: dict of w1,b1,...,w4,b4 (weights (in,out))."""
    B, f_in = x.shape
    d1 = params["w1"].shape[1]
    d2 = params["w2"].shape[1]
    d3 = params["w3"].shape[1]
    out_dim = params["w4"].shape[1]
    out_pad = _round_up(max(out_dim, _LANE), _LANE)

    # Weight prep (tiny, done once per call):
    #   * w2/w3/w4 cast to bf16 for the MXU (biases stay f32).
    #   * w4/b4 zero-padded to 128 cols so the last MXU pass is lane-aligned;
    #     padded columns are exact zeros and are sliced off inside the kernel.
    w2 = params["w2"].astype(jnp.bfloat16)
    w3 = params["w3"].astype(jnp.bfloat16)
    w4 = jnp.zeros((d3, out_pad), jnp.bfloat16).at[:, :out_dim].set(
        params["w4"].astype(jnp.bfloat16))
    b4 = jnp.zeros((1, out_pad), jnp.float32).at[:, :out_dim].set(params["b4"])

    # ---- Generation-aware batch tiling (~5 KiB VMEM per row incl. buffers).
    vmem_cap = _tpu_vmem_capacity_bytes()
    if vmem_cap >= 96 * 1024 * 1024:          # v5e / v6e: 128 MiB VMEM
        tile_cap, vmem_limit = 8192, 100 * 1024 * 1024
    else:                                     # v7x: 64 MiB per TensorCore
        tile_cap, vmem_limit = 2048, 52 * 1024 * 1024

    if tile_b is None:
        tile_b = tile_cap
    tile_b = _round_up(max(8, min(tile_b, tile_cap)), 8)
    tile_b = min(tile_b, _round_up(B, 8))
    if B >= 1024:
        # Guarantee >=4 grid steps for large batches: dual-TC occupancy on
        # v7x ("parallel" batch axis) and pipeline overlap everywhere.
        tile_b = min(tile_b, max(256, _round_up(pl.cdiv(B, 4), 256)))

    b_pad = _round_up(B, tile_b)
    if b_pad != B:
        x = jnp.pad(x, ((0, b_pad - B), (0, 0)))
    grid = (b_pad // tile_b,)

    def pinned(shape):
        # Same block every grid step -> weight/bias stays resident in VMEM.
        return pl.BlockSpec(shape, lambda i: (0, 0))

    flops = 2 * b_pad * (f_in * d1 + d1 * d2 + d2 * d3 + d3 * out_pad)
    bytes_accessed = (4 * b_pad * f_in + 4 * b_pad * out_dim
                      + 4 * (f_in * d1 + d1 + d2 + d3 + out_pad)
                      + 2 * (d1 * d2 + d2 * d3 + d3 * out_pad))

    out = pl.pallas_call(
        _mlp_kernel,
        out_shape=jax.ShapeDtypeStruct((b_pad, out_dim), jnp.float32),
        grid=grid,
        in_specs=[
            pl.BlockSpec((tile_b, f_in), lambda i: (i, 0)),   # x streamed per tile
            pinned((f_in, d1)), pinned((1, d1)),
            pinned((d1, d2)), pinned((1, d2)),
            pinned((d2, d3)), pinned((1, d3)),
            pinned((d3, out_pad)), pinned((1, out_pad)),
        ],
        out_specs=pl.BlockSpec((tile_b, out_dim), lambda i: (i, 0)),
        compiler_params=pltpu.CompilerParams(
            dimension_semantics=("parallel",),     # shard batch tiles across TCs (v7x)
            vmem_limit_bytes=vmem_limit,
        ),
        cost_estimate=pl.CostEstimate(
            flops=flops, transcendentals=0, bytes_accessed=bytes_accessed),
    )(x,
      params["w1"], params["b1"],
      w2, params["b2"],
      w3, params["b3"],
      w4, b4)

    return out if b_pad == B else out[:B]


def init_params(key, tokensize=TOKENSIZE):
    """Deterministic init matching PyTorch nn.Linear default:
    U(-1/sqrt(fan_in), 1/sqrt(fan_in)) for both weight and bias.
    Weights stored as (in_features, out_features)."""
    dims = [(4, 64), (64, 256), (256, 64), (64, tokensize)]
    params = {}
    keys = jax.random.split(key, 2 * len(dims))
    for i, (fan_in, fan_out) in enumerate(dims):
        bound = 1.0 / jnp.sqrt(jnp.float32(fan_in))
        w = jax.random.uniform(keys[2 * i], (fan_in, fan_out),
                               minval=-bound, maxval=bound, dtype=jnp.float32)
        b = jax.random.uniform(keys[2 * i + 1], (1, fan_out),
                               minval=-bound, maxval=bound, dtype=jnp.float32)
        params[f"w{i + 1}"] = w
        params[f"b{i + 1}"] = b
    return params


def mlp_reference(x, params):
    """Full-precision f32 reference of the PyTorch forward."""
    h = x
    for i in range(1, 5):
        h = jnp.maximum(
            jnp.dot(h, params[f"w{i}"], precision=jax.lax.Precision.HIGHEST)
            + params[f"b{i}"], 0.0)
    return h


if __name__ == "__main__":
    key = jax.random.PRNGKey(0)
    k_params, k_x1, k_x2 = jax.random.split(key, 3)

    params = init_params(k_params, tokensize=TOKENSIZE)

    # Tolerance accommodates bf16 MXU operands (f32 accumulation) in the
    # kernel vs. the exact-f32 reference; activations are O(0.1-1).
    tol = dict(atol=2e-2, rtol=2e-2)

    # Small batch: single-tile path (B=8, in_features=4).
    x_small = jax.random.normal(k_x1, (8, 4), dtype=jnp.float32)
    out_small = jax.block_until_ready(mlp_forward(x_small, params))
    ref_small = mlp_reference(x_small, params)
    assert out_small.shape == (8, TOKENSIZE), out_small.shape
    assert jnp.allclose(out_small, ref_small, **tol), "small-batch mismatch vs reference"

    # Multi-tile path: exercises batch padding + pipelined grid (still tiny data).
    x_big = jax.random.normal(k_x2, (300, 4), dtype=jnp.float32)
    out_big = jax.block_until_ready(mlp_forward(x_big, params, tile_b=128))
    ref_big = mlp_reference(x_big, params)
    assert out_big.shape == (300, TOKENSIZE), out_big.shape
    assert jnp.allclose(out_big, ref_big, **tol), "multi-tile mismatch vs reference"

    print("KERNEL_OK")
</pallas_src>

<mosaic_0001>
module attributes {stable_mosaic.version = 11 : i64} {
  func.func @_mlp_kernel(%arg0: i32, %arg1: memref<8x4xf32, #tpu.memory_space<vmem>>, %arg2: memref<4x64xf32, #tpu.memory_space<vmem>>, %arg3: memref<1x64xf32, #tpu.memory_space<vmem>>, %arg4: memref<64x256xbf16, #tpu.memory_space<vmem>>, %arg5: memref<1x256xf32, #tpu.memory_space<vmem>>, %arg6: memref<256x64xbf16, #tpu.memory_space<vmem>>, %arg7: memref<1x64xf32, #tpu.memory_space<vmem>>, %arg8: memref<64x128xbf16, #tpu.memory_space<vmem>>, %arg9: memref<1x128xf32, #tpu.memory_space<vmem>>, %arg10: memref<8x10xf32, #tpu.memory_space<vmem>>) attributes {dimension_semantics = [#tpu.dimension_semantics<parallel>], iteration_bounds = array<i64: 1>, scalar_prefetch = 0 : i64, scratch_operands = 0 : i64, tpu.core_type = #tpu.core_type<tc>, window_params = [{transform_indices = @transform_0, window_bounds = array<i64: 8, 4>}, {pipeline_mode = #tpu.pipeline_mode<synchronous>, transform_indices = @transform_1, window_bounds = array<i64: 4, 64>}, {pipeline_mode = #tpu.pipeline_mode<synchronous>, transform_indices = @transform_2, window_bounds = array<i64: 1, 64>}, {pipeline_mode = #tpu.pipeline_mode<synchronous>, transform_indices = @transform_3, window_bounds = array<i64: 64, 256>}, {pipeline_mode = #tpu.pipeline_mode<synchronous>, transform_indices = @transform_4, window_bounds = array<i64: 1, 256>}, {pipeline_mode = #tpu.pipeline_mode<synchronous>, transform_indices = @transform_5, window_bounds = array<i64: 256, 64>}, {pipeline_mode = #tpu.pipeline_mode<synchronous>, transform_indices = @transform_6, window_bounds = array<i64: 1, 64>}, {pipeline_mode = #tpu.pipeline_mode<synchronous>, transform_indices = @transform_7, window_bounds = array<i64: 64, 128>}, {pipeline_mode = #tpu.pipeline_mode<synchronous>, transform_indices = @transform_8, window_bounds = array<i64: 1, 128>}, {transform_indices = @transform_9, window_bounds = array<i64: 8, 10>}]} {
    %c0 = arith.constant 0 : index
    %c0_0 = arith.constant 0 : index
    %0 = vector.load %arg1[%c0, %c0_0] : memref<8x4xf32, #tpu.memory_space<vmem>>, vector<8x4xf32>
    %c0_1 = arith.constant 0 : index
    %c0_2 = arith.constant 0 : index
    %1 = vector.load %arg2[%c0_1, %c0_2] : memref<4x64xf32, #tpu.memory_space<vmem>>, vector<4x64xf32>
    %2 = vector.extract_strided_slice %0 {offsets = [0, 0], sizes = [8, 1], strides = [1, 1]} : vector<8x4xf32> to vector<8x1xf32>
    %3 = vector.extract_strided_slice %1 {offsets = [0, 0], sizes = [1, 64], strides = [1, 1]} : vector<4x64xf32> to vector<1x64xf32>
    %4 = vector.broadcast %2 : vector<8x1xf32> to vector<8x64xf32>
    %5 = vector.broadcast %3 : vector<1x64xf32> to vector<8x64xf32>
    %6 = arith.mulf %4, %5 : vector<8x64xf32>
    %7 = vector.extract_strided_slice %0 {offsets = [0, 1], sizes = [8, 1], strides = [1, 1]} : vector<8x4xf32> to vector<8x1xf32>
    %8 = vector.extract_strided_slice %1 {offsets = [1, 0], sizes = [1, 64], strides = [1, 1]} : vector<4x64xf32> to vector<1x64xf32>
    %9 = vector.broadcast %7 : vector<8x1xf32> to vector<8x64xf32>
    %10 = vector.broadcast %8 : vector<1x64xf32> to vector<8x64xf32>
    %11 = arith.mulf %9, %10 : vector<8x64xf32>
    %12 = arith.addf %6, %11 : vector<8x64xf32>
    %13 = vector.extract_strided_slice %0 {offsets = [0, 2], sizes = [8, 1], strides = [1, 1]} : vector<8x4xf32> to vector<8x1xf32>
    %14 = vector.extract_strided_slice %1 {offsets = [2, 0], sizes = [1, 64], strides = [1, 1]} : vector<4x64xf32> to vector<1x64xf32>
    %15 = vector.broadcast %13 : vector<8x1xf32> to vector<8x64xf32>
    %16 = vector.broadcast %14 : vector<1x64xf32> to vector<8x64xf32>
    %17 = arith.mulf %15, %16 : vector<8x64xf32>
    %18 = vector.extract_strided_slice %0 {offsets = [0, 3], sizes = [8, 1], strides = [1, 1]} : vector<8x4xf32> to vector<8x1xf32>
    %19 = vector.extract_strided_slice %1 {offsets = [3, 0], sizes = [1, 64], strides = [1, 1]} : vector<4x64xf32> to vector<1x64xf32>
    %20 = vector.broadcast %18 : vector<8x1xf32> to vector<8x64xf32>
    %21 = vector.broadcast %19 : vector<1x64xf32> to vector<8x64xf32>
    %22 = arith.mulf %20, %21 : vector<8x64xf32>
    %23 = arith.addf %17, %22 : vector<8x64xf32>
    %24 = arith.addf %12, %23 : vector<8x64xf32>
    %c0_3 = arith.constant 0 : index
    %c0_4 = arith.constant 0 : index
    %25 = vector.load %arg3[%c0_3, %c0_4] : memref<1x64xf32, #tpu.memory_space<vmem>>, vector<1x64xf32>
    %26 = vector.broadcast %25 : vector<1x64xf32> to vector<8x64xf32>
    %27 = arith.addf %24, %26 : vector<8x64xf32>
    %cst = arith.constant 0.000000e+00 : f32
    %28 = vector.broadcast %cst : f32 to vector<8x64xf32>
    %29 = arith.maximumf %27, %28 : vector<8x64xf32>
    %30 = arith.truncf %29 : vector<8x64xf32> to vector<8x64xbf16>
    %c0_5 = arith.constant 0 : index
    %c0_6 = arith.constant 0 : index
    %31 = vector.load %arg4[%c0_5, %c0_6] : memref<64x256xbf16, #tpu.memory_space<vmem>>, vector<64x256xbf16>
    %cst_7 = arith.constant dense<0.000000e+00> : vector<8x256xf32>
    %32 = tpu.matmul %30, %31, %cst_7 {dimension_numbers = #tpu.dot_dimension_numbers<[1], [0], [0], [1], [0, 0, 1, 1], [], []>} : vector<8x64xbf16>, vector<64x256xbf16>, vector<8x256xf32> -> vector<8x256xf32>
    %c0_8 = arith.constant 0 : index
    %c0_9 = arith.constant 0 : index
    %33 = vector.load %arg5[%c0_8, %c0_9] : memref<1x256xf32, #tpu.memory_space<vmem>>, vector<1x256xf32>
    %34 = vector.broadcast %33 : vector<1x256xf32> to vector<8x256xf32>
    %35 = arith.addf %32, %34 : vector<8x256xf32>
    %cst_10 = arith.constant 0.000000e+00 : f32
    %36 = vector.broadcast %cst_10 : f32 to vector<8x256xf32>
    %37 = arith.maximumf %35, %36 : vector<8x256xf32>
    %38 = arith.truncf %37 : vector<8x256xf32> to vector<8x256xbf16>
    %c0_11 = arith.constant 0 : index
    %c0_12 = arith.constant 0 : index
    %39 = vector.load %arg6[%c0_11, %c0_12] : memref<256x64xbf16, #tpu.memory_space<vmem>>, vector<256x64xbf16>
    %cst_13 = arith.constant dense<0.000000e+00> : vector<8x64xf32>
    %40 = tpu.matmul %38, %39, %cst_13 {dimension_numbers = #tpu.dot_dimension_numbers<[1], [0], [0], [1], [0, 0, 1, 1], [], []>} : vector<8x256xbf16>, vector<256x64xbf16>, vector<8x64xf32> -> vector<8x64xf32>
    %c0_14 = arith.constant 0 : index
    %c0_15 = arith.constant 0 : index
    %41 = vector.load %arg7[%c0_14, %c0_15] : memref<1x64xf32, #tpu.memory_space<vmem>>, vector<1x64xf32>
    %42 = vector.broadcast %41 : vector<1x64xf32> to vector<8x64xf32>
    %43 = arith.addf %40, %42 : vector<8x64xf32>
    %cst_16 = arith.constant 0.000000e+00 : f32
    %44 = vector.broadcast %cst_16 : f32 to vector<8x64xf32>
    %45 = arith.maximumf %43, %44 : vector<8x64xf32>
    %46 = arith.truncf %45 : vector<8x64xf32> to vector<8x64xbf16>
    %c0_17 = arith.constant 0 : index
    %c0_18 = arith.constant 0 : index
    %47 = vector.load %arg8[%c0_17, %c0_18] : memref<64x128xbf16, #tpu.memory_space<vmem>>, vector<64x128xbf16>
    %cst_19 = arith.constant dense<0.000000e+00> : vector<8x128xf32>
    %48 = tpu.matmul %46, %47, %cst_19 {dimension_numbers = #tpu.dot_dimension_numbers<[1], [0], [0], [1], [0, 0, 1, 1], [], []>} : vector<8x64xbf16>, vector<64x128xbf16>, vector<8x128xf32> -> vector<8x128xf32>
    %c0_20 = arith.constant 0 : index
    %c0_21 = arith.constant 0 : index
    %49 = vector.load %arg9[%c0_20, %c0_21] : memref<1x128xf32, #tpu.memory_space<vmem>>, vector<1x128xf32>
    %50 = vector.broadcast %49 : vector<1x128xf32> to vector<8x128xf32>
    %51 = arith.addf %48, %50 : vector<8x128xf32>
    %cst_22 = arith.constant 0.000000e+00 : f32
    %52 = vector.broadcast %cst_22 : f32 to vector<8x128xf32>
    %53 = arith.maximumf %51, %52 : vector<8x128xf32>
    %54 = vector.extract_strided_slice %53 {offsets = [0, 0], sizes = [8, 10], strides = [1, 1]} : vector<8x128xf32> to vector<8x10xf32>
    %c0_23 = arith.constant 0 : index
    %c0_24 = arith.constant 0 : index
    %55 = vector.load %arg10[%c0_23, %c0_24] : memref<8x10xf32, #tpu.memory_space<vmem>>, vector<8x10xf32>
    tpu.vector_store %arg10[%c0_23, %c0_24], %54 {strides = array<i32>} : memref<8x10xf32, #tpu.memory_space<vmem>>, vector<8x10xf32>,
    return
  }
  func.func @transform_0(%arg0: i32) -> (i32, i32) {
    %c0_i32 = arith.constant 0 : i32
    %c0_i32_0 = arith.constant 0 : i32
    return %arg0, %c0_i32 : i32, i32
  }
  func.func @transform_1(%arg0: i32) -> (i32, i32) {
    %c0_i32 = arith.constant 0 : i32
    %c0_i32_0 = arith.constant 0 : i32
    %c0_i32_1 = arith.constant 0 : i32
    return %c0_i32, %c0_i32_0 : i32, i32
  }
  func.func @transform_2(%arg0: i32) -> (i32, i32) {
    %c0_i32 = arith.constant 0 : i32
    %c0_i32_0 = arith.constant 0 : i32
    %c0_i32_1 = arith.constant 0 : i32
    return %c0_i32, %c0_i32_0 : i32, i32
  }
  func.func @transform_3(%arg0: i32) -> (i32, i32) {
    %c0_i32 = arith.constant 0 : i32
    %c0_i32_0 = arith.constant 0 : i32
    %c0_i32_1 = arith.constant 0 : i32
    return %c0_i32, %c0_i32_0 : i32, i32
  }
  func.func @transform_4(%arg0: i32) -> (i32, i32) {
    %c0_i32 = arith.constant 0 : i32
    %c0_i32_0 = arith.constant 0 : i32
    %c0_i32_1 = arith.constant 0 : i32
    return %c0_i32, %c0_i32_0 : i32, i32
  }
  func.func @transform_5(%arg0: i32) -> (i32, i32) {
    %c0_i32 = arith.constant 0 : i32
    %c0_i32_0 = arith.constant 0 : i32
    %c0_i32_1 = arith.constant 0 : i32
    return %c0_i32, %c0_i32_0 : i32, i32
  }
  func.func @transform_6(%arg0: i32) -> (i32, i32) {
    %c0_i32 = arith.constant 0 : i32
    %c0_i32_0 = arith.constant 0 : i32
    %c0_i32_1 = arith.constant 0 : i32
    return %c0_i32, %c0_i32_0 : i32, i32
  }
  func.func @transform_7(%arg0: i32) -> (i32, i32) {
    %c0_i32 = arith.constant 0 : i32
    %c0_i32_0 = arith.constant 0 : i32
    %c0_i32_1 = arith.constant 0 : i32
    return %c0_i32, %c0_i32_0 : i32, i32
  }
  func.func @transform_8(%arg0: i32) -> (i32, i32) {
    %c0_i32 = arith.constant 0 : i32
    %c0_i32_0 = arith.constant 0 : i32
    %c0_i32_1 = arith.constant 0 : i32
    return %c0_i32, %c0_i32_0 : i32, i32
  }
  func.func @transform_9(%arg0: i32) -> (i32, i32) {
    %c0_i32 = arith.constant 0 : i32
    %c0_i32_0 = arith.constant 0 : i32
    return %arg0, %c0_i32 : i32, i32
  }
}

</mosaic_0001>

<llo_original>
// kernel: tpu_custom_call.1
$region0: #{tpu_custom_call.1}
  #allocation0 [shape = 'u32[]', space=smem, size = 0x4, offset = 0x4, fixed_abs, tag = 'smem constant byte address 0x4 - core index']
  #allocation1 [shape = 'u32[144,128]{1,0:T(1,128)}', space=vmem, size = 0x12000, scoped, tag = 'internal scratch']
  %s0 = inlined_call_operand.vmem [shape: f32[8,4], index: 0, kind: input, shape index: {}]
  %s1 = inlined_call_operand.vmem [shape: f32[4,64], index: 1, kind: input, shape index: {}]
  %s2 = inlined_call_operand.vmem [shape: f32[1,64], index: 2, kind: input, shape index: {}]
  %s3 = inlined_call_operand.vmem [shape: bf16[64,256], index: 3, kind: input, shape index: {}]
  %s4 = inlined_call_operand.vmem [shape: f32[1,256], index: 4, kind: input, shape index: {}]
  %s5 = inlined_call_operand.vmem [shape: bf16[256,64], index: 5, kind: input, shape index: {}]
  %s6 = inlined_call_operand.vmem [shape: f32[1,64], index: 6, kind: input, shape index: {}]
  %s7 = inlined_call_operand.vmem [shape: bf16[64,128], index: 7, kind: input, shape index: {}]
  %s8 = inlined_call_operand.vmem [shape: f32[1,128], index: 8, kind: input, shape index: {}]
  %s9 = inlined_call_operand.hbm [shape: f32[8,10], index: 9, kind: output, shape index: {}]
  %s10 = sld [smem:[#allocation0]]
  $region46: #{tpu_custom_call.1} parent=0
    _
  %s12 = ssub.s32 1, %s10
  %s13 = scalar_select 0, %s12, %s10
  $region1: #{tpu_custom_call.1} parent=0
    #allocation2 [shape = 'u8[4096]{0}', space=vmem, size = 0x1000, scoped, tag = 'output window, operand 0, single buffered']
    #allocation3 [shape = 's32[1]{0}', space=sflag, size = 0x4, scoped, tag = 'scoped memory for tpu_custom_call.1']
    %14 = vsyncpa [#allocation3], 0
    // Predicated region
    $region2: #{tpu_custom_call.1} parent=1 // pred_check
      _
    $region3: #{tpu_custom_call.1} parent=1 // pred_check_branch
      %16 = sbr.rel (0) target = $region5
    $region4: #{tpu_custom_call.1} parent=1 // pred_region
      _
    $region5: #{tpu_custom_call.1} parent=1 // pred_fallthru
      _
    // Predicated region
    $region6: #{tpu_custom_call.1} parent=1 // pred_check
      _
    $region7: #{tpu_custom_call.1} parent=1 // pred_check_branch
      %18 = sbr.rel (0) target = $region9
    $region8: #{tpu_custom_call.1} parent=1 // pred_region
      _
    $region9: #{tpu_custom_call.1} parent=1 // pred_fallthru
      _
    // Predicated region
    $region10: #{tpu_custom_call.1} parent=1 // pred_check
      _
    $region11: #{tpu_custom_call.1} parent=1 // pred_check_branch
      %20 = sbr.rel (0) target = $region13
    $region12: #{tpu_custom_call.1} parent=1 // pred_region
      _
    $region13: #{tpu_custom_call.1} parent=1 // pred_fallthru
      _
    // Predicated region
    $region14: #{tpu_custom_call.1} parent=1 // pred_check
      _
    $region15: #{tpu_custom_call.1} parent=1 // pred_check_branch
      %22 = sbr.rel (0) target = $region17
    $region16: #{tpu_custom_call.1} parent=1 // pred_region
      _
    $region17: #{tpu_custom_call.1} parent=1 // pred_fallthru
      _
    // Predicated region
    $region18: #{tpu_custom_call.1} parent=1 // pred_check
      _
    $region19: #{tpu_custom_call.1} parent=1 // pred_check_branch
      %24 = sbr.rel (0) target = $region21
    $region20: #{tpu_custom_call.1} parent=1 // pred_region
      _
    $region21: #{tpu_custom_call.1} parent=1 // pred_fallthru
      _
    // Predicated region
    $region22: #{tpu_custom_call.1} parent=1 // pred_check
      _
    $region23: #{tpu_custom_call.1} parent=1 // pred_check_branch
      %26 = sbr.rel (0) target = $region25
    $region24: #{tpu_custom_call.1} parent=1 // pred_region
      _
    $region25: #{tpu_custom_call.1} parent=1 // pred_fallthru
      _
    // Predicated region
    $region26: #{tpu_custom_call.1} parent=1 // pred_check
      _
    $region27: #{tpu_custom_call.1} parent=1 // pred_check_branch
      %28 = sbr.rel (0) target = $region29
    $region28: #{tpu_custom_call.1} parent=1 // pred_region
      _
    $region29: #{tpu_custom_call.1} parent=1 // pred_fallthru
      _
    // Predicated region
    $region30: #{tpu_custom_call.1} parent=1 // pred_check
      _
    $region31: #{tpu_custom_call.1} parent=1 // pred_check_branch
      %30 = sbr.rel (0) target = $region33
    $region32: #{tpu_custom_call.1} parent=1 // pred_region
      _
    $region33: #{tpu_custom_call.1} parent=1 // pred_fallthru
      _
    // Predicated region
    $region34: #{tpu_custom_call.1} parent=1 // pred_check
      _
    $region35: #{tpu_custom_call.1} parent=1 // pred_check_branch
      %32 = sbr.rel (0) target = $region37
    $region36: #{tpu_custom_call.1} parent=1 // pred_region
      _
    $region37: #{tpu_custom_call.1} parent=1 // pred_fallthru
      _
    %v34 = vld [vmem:[%s0] sm:$0xff]
    %v35 = vld [vmem:[%s1] sm:$0xf]
    %37 = vset.pattern.permute.xlu0 0
    %38 = vperm.xlu0 %37, %v34
    %v39 = vpop.permute.xlu0 %38
    %v41 = vlaneseq
    %v42 = vshrl.u32 %v41, 7
    %v43 = vsub.s32 0, %v42
    %v44 = vrot.slane %v35, %v43
    %v45 = vmul.f32 %v39, %v44
    %46 = vset.pattern.permute.xlu0 1
    %47 = vperm.xlu0 %46, %v34
    %v48 = vpop.permute.xlu0 %47
    %v50 = vlaneseq
    %v51 = vshrl.u32 %v50, 7
    %v52 = vsub.s32 1, %v51
    %v53 = vrot.slane %v35, %v52
    %v54 = vmul.f32 %v48, %v53
    %v55 = vadd.f32 %v45, %v54
    %56 = vset.pattern.permute.xlu0 2
    %57 = vperm.xlu0 %56, %v34
    %v58 = vpop.permute.xlu0 %57
    %v60 = vlaneseq
    %v61 = vshrl.u32 %v60, 7
    %v62 = vsub.s32 2, %v61
    %v63 = vrot.slane %v35, %v62
    %v64 = vmul.f32 %v58, %v63
    %65 = vset.pattern.permute.xlu0 3
    %66 = vperm.xlu0 %65, %v34
    %v67 = vpop.permute.xlu0 %66
    %v69 = vlaneseq
    %v70 = vshrl.u32 %v69, 7
    %v71 = vsub.s32 3, %v70
    %v72 = vrot.slane %v35, %v71
    %v73 = vmul.f32 %v67, %v72
    %v74 = vadd.f32 %v64, %v73
    %v75 = vadd.f32 %v55, %v74
    %v76 = vld [vmem:[%s2] sm:$0x1]
    %v78 = vlaneseq
    %v79 = vshrl.u32 %v78, 7
    %v80 = vsub.s32 0, %v79
    %v81 = vrot.slane %v76, %v80
    %v83 = vadd.f32 %v75, %v81
    %v84 = vmax.f32 %v83, 0.0
    %v85 = vpack.c.bf16 %v84, %v84
    %v86 = vld [vmem:[%s3] sm:$0xff]
    %v87 = vld [vmem:[%s3 + $0x8] sm:$0xff]
    %v88 = vld [vmem:[%s3 + $0x10] sm:$0xff]
    %v89 = vld [vmem:[%s3 + $0x18] sm:$0xff]
    %v90 = vld [vmem:[%s3 + $0x20] sm:$0xff]
    %v91 = vld [vmem:[%s3 + $0x28] sm:$0xff]
    %v92 = vld [vmem:[%s3 + $0x30] sm:$0xff]
    %v93 = vld [vmem:[%s3 + $0x38] sm:$0xff]
    %v94 = vld [vmem:[%s4] sm:$0x3]
    %v96 = vlaneseq
    %v97 = vshrl.u32 %v96, 7
    %v98 = vsub.s32 0, %v97
    %v99 = vrot.slane %v94, %v98
    %v100 = vlaneseq
    %v101 = vshrl.u32 %v100, 7
    %v102 = vsub.s32 1, %v101
    %v103 = vrot.slane %v94, %v102
    %v114 = vunpack.c.l.b16 %v86
    %v115 = vunpack.c.h.b16 %v86
    %v116 = vunpack.c.l.b16 %v87
    %v117 = vunpack.c.h.b16 %v87
    %v118 = vunpack.c.l.b16 %v88
    %v119 = vunpack.c.h.b16 %v88
    %v120 = vunpack.c.l.b16 %v89
    %v121 = vunpack.c.h.b16 %v89
    %v122 = vunpack.c.l.b16 %v90
    %v123 = vunpack.c.h.b16 %v90
    %v124 = vunpack.c.l.b16 %v91
    %v125 = vunpack.c.h.b16 %v91
    %v126 = vunpack.c.l.b16 %v92
    %v127 = vunpack.c.h.b16 %v92
    %v128 = vunpack.c.l.b16 %v93
    %v129 = vunpack.c.h.b16 %v93
    %v130 = vpack.c.b16 %v116, %v114
    %v131 = vpack.c.b16 %v117, %v115
    %v132 = vpack.c.b16 %v120, %v118
    %v133 = vpack.c.b16 %v121, %v119
    %v134 = vpack.c.b16 %v124, %v122
    %v135 = vpack.c.b16 %v125, %v123
    %v136 = vpack.c.b16 %v128, %v126
    %v137 = vpack.c.b16 %v129, %v127
    %vm146 = vcmask 523264
    %v148 = vsel %vm146, %v85, 0
    %150 = vmatprep.subr.bf16.mxu0 %v131
    %151 = vmatpush1.bf16.msra.mxu0 %v130
    %152 = vmatprep.subr.bf16.mxu0 %v133
    %153 = vmatpush1.bf16.msra.mxu0 %v132
    %154 = vmatprep.subr.bf16.mxu0 %v135
    %155 = vmatpush1.bf16.msra.mxu0 %v134
    %156 = vmatprep.subr.bf16.mxu0 %v137
    %157 = vmatpush1.bf16.msra.mxu0 %v136
    %158 = vmatprep.subr.bf16.mxu0 0
    %159 = vmatpush1.bf16.msra.mxu0 0
    %160 = vmatprep.subr.bf16.mxu0 0
    %161 = vmatpush1.bf16.msra.mxu0 0
    %162 = vmatprep.subr.bf16.mxu0 0
    %163 = vmatpush1.bf16.msra.mxu0 0
    %164 = vmatprep.subr.bf16.mxu0 0
    %165 = vmatpush1.bf16.msra.mxu0 0
    %166 = vmatprep.subr.bf16.mxu0 0
    %167 = vmatpush1.bf16.msra.mxu0 0
    %168 = vmatprep.subr.bf16.mxu0 0
    %169 = vmatpush1.bf16.msra.mxu0 0
    %170 = vmatprep.subr.bf16.mxu0 0
    %171 = vmatpush1.bf16.msra.mxu0 0
    %172 = vmatprep.subr.bf16.mxu0 0
    %173 = vmatpush1.bf16.msra.mxu0 0
    %174 = vmatprep.subr.bf16.mxu0 0
    %175 = vmatpush1.bf16.msra.mxu0 0
    %176 = vmatprep.subr.bf16.mxu0 0
    %177 = vmatpush1.bf16.msra.mxu0 0
    %178 = vmatprep.subr.bf16.mxu0 0
    %179 = vmatpush1.bf16.msra.mxu0 0
    %180 = vmatprep.subr.bf16.mxu0 0
    %181 = vmatpush1.bf16.msra.mxu0 0
    %182 = vmatprep.mubr.bf16.mxu0 0
    %183 = vmatmul.mubr.bf16.gmra.mrb[0].mxu0 %v148
    %v184 = vpop.f32.mrb[0].mxu0
    %v185 = vadd.f32 %v99, %v184
    %v186 = vpop.f32.mrb[0].mxu0
    %v187 = vadd.f32 %v103, %v186
    %v188 = vpop.f32.mrb[0].mxu0
    %v189 = vpop.f32.mrb[0].mxu0
    %190 = vdwg.mxu0
    %v191 = vmax.f32 %v185, 0.0
    %v192 = vmax.f32 %v187, 0.0
    %v193 = vpack.c.bf16 %v191, %v191
    %v194 = vpack.c.bf16 %v192, %v192
    %v195 = vld [vmem:[%s5] sm:$0xf]
    %v196 = vld [vmem:[%s5 + $0x4] sm:$0xf]
    %v197 = vld [vmem:[%s5 + $0x8] sm:$0xf]
    %v198 = vld [vmem:[%s5 + $0xc] sm:$0xf]
    %v199 = vld [vmem:[%s5 + $0x10] sm:$0xf]
    %v200 = vld [vmem:[%s5 + $0x14] sm:$0xf]
    %v201 = vld [vmem:[%s5 + $0x18] sm:$0xf]
    %v202 = vld [vmem:[%s5 + $0x1c] sm:$0xf]
    %v203 = vld [vmem:[%s5 + $0x20] sm:$0xf]
    %v204 = vld [vmem:[%s5 + $0x24] sm:$0xf]
    %v205 = vld [vmem:[%s5 + $0x28] sm:$0xf]
    %v206 = vld [vmem:[%s5 + $0x2c] sm:$0xf]
    %v207 = vld [vmem:[%s5 + $0x30] sm:$0xf]
    %v208 = vld [vmem:[%s5 + $0x34] sm:$0xf]
    %v209 = vld [vmem:[%s5 + $0x38] sm:$0xf]
    %v210 = vld [vmem:[%s5 + $0x3c] sm:$0xf]
    %v211 = vld [vmem:[%s5 + $0x40] sm:$0xf]
    %v212 = vld [vmem:[%s5 + $0x44] sm:$0xf]
    %v213 = vld [vmem:[%s5 + $0x48] sm:$0xf]
    %v214 = vld [vmem:[%s5 + $0x4c] sm:$0xf]
    %v215 = vld [vmem:[%s5 + $0x50] sm:$0xf]
    %v216 = vld [vmem:[%s5 + $0x54] sm:$0xf]
    %v217 = vld [vmem:[%s5 + $0x58] sm:$0xf]
    %v218 = vld [vmem:[%s5 + $0x5c] sm:$0xf]
    %v219 = vld [vmem:[%s5 + $0x60] sm:$0xf]
    %v220 = vld [vmem:[%s5 + $0x64] sm:$0xf]
    %v221 = vld [vmem:[%s5 + $0x68] sm:$0xf]
    %v222 = vld [vmem:[%s5 + $0x6c] sm:$0xf]
    %v223 = vld [vmem:[%s5 + $0x70] sm:$0xf]
    %v224 = vld [vmem:[%s5 + $0x74] sm:$0xf]
    %v225 = vld [vmem:[%s5 + $0x78] sm:$0xf]
    %v226 = vld [vmem:[%s5 + $0x7c] sm:$0xf]
    %v227 = vld [vmem:[%s6] sm:$0x1]
    %v229 = vlaneseq
    %v230 = vshrl.u32 %v229, 7
    %v231 = vsub.s32 0, %v230
    %v232 = vrot.slane %v227, %v231
    %v266 = vunpack.c.l.b16 %v195
    %v267 = vunpack.c.l.b16 %v196
    %v268 = vunpack.c.l.b16 %v197
    %v269 = vunpack.c.l.b16 %v198
    %v270 = vunpack.c.l.b16 %v199
    %v271 = vunpack.c.l.b16 %v200
    %v272 = vunpack.c.l.b16 %v201
    %v273 = vunpack.c.l.b16 %v202
    %v274 = vunpack.c.l.b16 %v203
    %v275 = vunpack.c.l.b16 %v204
    %v276 = vunpack.c.l.b16 %v205
    %v277 = vunpack.c.l.b16 %v206
    %v278 = vunpack.c.l.b16 %v207
    %v279 = vunpack.c.l.b16 %v208
    %v280 = vunpack.c.l.b16 %v209
    %v281 = vunpack.c.l.b16 %v210
    %v282 = vunpack.c.l.b16 %v211
    %v283 = vunpack.c.l.b16 %v212
    %v284 = vunpack.c.l.b16 %v213
    %v285 = vunpack.c.l.b16 %v214
    %v286 = vunpack.c.l.b16 %v215
    %v287 = vunpack.c.l.b16 %v216
    %v288 = vunpack.c.l.b16 %v217
    %v289 = vunpack.c.l.b16 %v218
    %v290 = vunpack.c.l.b16 %v219
    %v291 = vunpack.c.l.b16 %v220
    %v292 = vunpack.c.l.b16 %v221
    %v293 = vunpack.c.l.b16 %v222
    %v294 = vunpack.c.l.b16 %v223
    %v295 = vunpack.c.l.b16 %v224
    %v296 = vunpack.c.l.b16 %v225
    %v297 = vunpack.c.l.b16 %v226
    %v298 = vpack.c.b16 %v267, %v266
    %v299 = vpack.c.b16 %v269, %v268
    %v300 = vpack.c.b16 %v271, %v270
    %v301 = vpack.c.b16 %v273, %v272
    %v302 = vpack.c.b16 %v275, %v274
    %v303 = vpack.c.b16 %v277, %v276
    %v304 = vpack.c.b16 %v279, %v278
    %v305 = vpack.c.b16 %v281, %v280
    %v306 = vpack.c.b16 %v283, %v282
    %v307 = vpack.c.b16 %v285, %v284
    %v308 = vpack.c.b16 %v287, %v286
    %v309 = vpack.c.b16 %v289, %v288
    %v310 = vpack.c.b16 %v291, %v290
    %v311 = vpack.c.b16 %v293, %v292
    %v312 = vpack.c.b16 %v295, %v294
    %v313 = vpack.c.b16 %v297, %v296
    %330 = vmatprep.subr.bf16.mxu0 0
    %331 = vmatpush1.bf16.msra.mxu0 %v298
    %332 = vmatprep.subr.bf16.mxu0 0
    %333 = vmatpush1.bf16.msra.mxu0 %v299
    %334 = vmatprep.subr.bf16.mxu0 0
    %335 = vmatpush1.bf16.msra.mxu0 %v300
    %336 = vmatprep.subr.bf16.mxu0 0
    %337 = vmatpush1.bf16.msra.mxu0 %v301
    %338 = vmatprep.subr.bf16.mxu0 0
    %339 = vmatpush1.bf16.msra.mxu0 %v302
    %340 = vmatprep.subr.bf16.mxu0 0
    %341 = vmatpush1.bf16.msra.mxu0 %v303
    %342 = vmatprep.subr.bf16.mxu0 0
    %343 = vmatpush1.bf16.msra.mxu0 %v304
    %344 = vmatprep.subr.bf16.mxu0 0
    %345 = vmatpush1.bf16.msra.mxu0 %v305
    %346 = vmatprep.subr.bf16.mxu0 0
    %347 = vmatpush1.bf16.msra.mxu0 %v306
    %348 = vmatprep.subr.bf16.mxu0 0
    %349 = vmatpush1.bf16.msra.mxu0 %v307
    %350 = vmatprep.subr.bf16.mxu0 0
    %351 = vmatpush1.bf16.msra.mxu0 %v308
    %352 = vmatprep.subr.bf16.mxu0 0
    %353 = vmatpush1.bf16.msra.mxu0 %v309
    %354 = vmatprep.subr.bf16.mxu0 0
    %355 = vmatpush1.bf16.msra.mxu0 %v310
    %356 = vmatprep.subr.bf16.mxu0 0
    %357 = vmatpush1.bf16.msra.mxu0 %v311
    %358 = vmatprep.subr.bf16.mxu0 0
    %359 = vmatpush1.bf16.msra.mxu0 %v312
    %360 = vmatprep.subr.bf16.mxu0 0
    %361 = vmatpush1.bf16.msra.mxu0 %v313
    %362 = vmatprep.mubr.bf16.mxu0 %v194
    %363 = vmatmul.mubr.bf16.gmra.mrb[0].mxu0 %v193
    %v364 = vpop.f32.mrb[0].mxu0
    %v365 = vadd.f32 %v232, %v364
    %v366 = vpop.f32.mrb[0].mxu0
    %v367 = vpop.f32.mrb[0].mxu0
    %v368 = vpop.f32.mrb[0].mxu0
    %369 = vdwg.mxu0
    %v370 = vmax.f32 %v365, 0.0
    %v371 = vpack.c.bf16 %v370, %v370
    %v372 = vld [vmem:[%s7] sm:$0xf]
    %v373 = vld [vmem:[%s7 + $0x4] sm:$0xf]
    %v374 = vld [vmem:[%s7 + $0x8] sm:$0xf]
    %v375 = vld [vmem:[%s7 + $0xc] sm:$0xf]
    %v376 = vld [vmem:[%s7 + $0x10] sm:$0xf]
    %v377 = vld [vmem:[%s7 + $0x14] sm:$0xf]
    %v378 = vld [vmem:[%s7 + $0x18] sm:$0xf]
    %v379 = vld [vmem:[%s7 + $0x1c] sm:$0xf]
    %v380 = vld [vmem:[%s8] sm:$0x1]
    %v382 = vlaneseq
    %v383 = vshrl.u32 %v382, 7
    %v384 = vsub.s32 0, %v383
    %v385 = vrot.slane %v380, %v384
    %v395 = vunpack.c.l.b16 %v372
    %v396 = vunpack.c.l.b16 %v373
    %v397 = vunpack.c.l.b16 %v374
    %v398 = vunpack.c.l.b16 %v375
    %v399 = vunpack.c.l.b16 %v376
    %v400 = vunpack.c.l.b16 %v377
    %v401 = vunpack.c.l.b16 %v378
    %v402 = vunpack.c.l.b16 %v379
    %v403 = vpack.c.b16 %v396, %v395
    %v404 = vpack.c.b16 %v398, %v397
    %v405 = vpack.c.b16 %v400, %v399
    %v406 = vpack.c.b16 %v402, %v401
    %v412 = vsel %vm146, %v371, 0
    %414 = vmatprep.subr.bf16.mxu0 0
    %415 = vmatpush1.bf16.msra.mxu0 %v403
    %416 = vmatprep.subr.bf16.mxu0 0
    %417 = vmatpush1.bf16.msra.mxu0 %v404
    %418 = vmatprep.subr.bf16.mxu0 0
    %419 = vmatpush1.bf16.msra.mxu0 %v405
    %420 = vmatprep.subr.bf16.mxu0 0
    %421 = vmatpush1.bf16.msra.mxu0 %v406
    %422 = vmatprep.subr.bf16.mxu0 0
    %423 = vmatpush1.bf16.msra.mxu0 0
    %424 = vmatprep.subr.bf16.mxu0 0
    %425 = vmatpush1.bf16.msra.mxu0 0
    %426 = vmatprep.subr.bf16.mxu0 0
    %427 = vmatpush1.bf16.msra.mxu0 0
    %428 = vmatprep.subr.bf16.mxu0 0
    %429 = vmatpush1.bf16.msra.mxu0 0
    %430 = vmatprep.subr.bf16.mxu0 0
    %431 = vmatpush1.bf16.msra.mxu0 0
    %432 = vmatprep.subr.bf16.mxu0 0
    %433 = vmatpush1.bf16.msra.mxu0 0
    %434 = vmatprep.subr.bf16.mxu0 0
    %435 = vmatpush1.bf16.msra.mxu0 0
    %436 = vmatprep.subr.bf16.mxu0 0
    %437 = vmatpush1.bf16.msra.mxu0 0
    %438 = vmatprep.subr.bf16.mxu0 0
    %439 = vmatpush1.bf16.msra.mxu0 0
    %440 = vmatprep.subr.bf16.mxu0 0
    %441 = vmatpush1.bf16.msra.mxu0 0
    %442 = vmatprep.subr.bf16.mxu0 0
    %443 = vmatpush1.bf16.msra.mxu0 0
    %444 = vmatprep.subr.bf16.mxu0 0
    %445 = vmatpush1.bf16.msra.mxu0 0
    %446 = vmatprep.mubr.bf16.mxu0 0
    %447 = vmatmul.mubr.bf16.gmra.mrb[0].mxu0 %v412
    %v448 = vpop.f32.mrb[0].mxu0
    %v449 = vadd.f32 %v385, %v448
    %v450 = vpop.f32.mrb[0].mxu0
    %v451 = vpop.f32.mrb[0].mxu0
    %v452 = vpop.f32.mrb[0].mxu0
    %453 = vdwg.mxu0
    %v454 = vmax.f32 %v449, 0.0
    %vm455 = vcmask 80896
    %456 = vst.msk [vmem:[#allocation2] sm:$0xff] %vm455, %v454
    // Predicated region
    $region38: #{tpu_custom_call.1} parent=1 // pred_check
      _
    $region39: #{tpu_custom_call.1} parent=1 // pred_check_branch
      %458 = sbr.rel (0) target = $region41
    $region40: #{tpu_custom_call.1} parent=1 // pred_region
      %s460 = ssub.s32 128, 128
      %461 = vsyncadd [#allocation3], %s460
      %s463 = sshll.u32 [#allocation2], 4
      %s464 = int_to_ptr.vmem [resolvable:$true] %s463
      %466 = dma.vmem_to_hbm [thread:$0]  %s464, 128, %s9, [#allocation3]
    $region41: #{tpu_custom_call.1} parent=1 // pred_fallthru
      _
    // Predicated region
    $region42: #{tpu_custom_call.1} parent=1 // pred_check
      _
    $region43: #{tpu_custom_call.1} parent=1 // pred_check_branch
      %468 = sbr.rel (0) target = $region45
    $region44: #{tpu_custom_call.1} parent=1 // pred_region
      %469 = dma.done [#allocation3], 128
    $region45: #{tpu_custom_call.1} parent=1 // pred_fallthru
      _
    %470 = vsyncpa [#allocation3], 1

</llo_original>
